<compile_context>
chip_gen: v7x
topology: tpu7x:2x2x1
jax: 0.10.0
libtpu: 0.0.40
codegen_flags: <defaults>
</compile_context>

<pallas_src>
import functools

import jax
import jax.numpy as jnp
from jax.experimental import pallas as pl
from jax.experimental.pallas import tpu as pltpu

_OUT_ROWS = 8                 # sublane-dense output slab height (rows 0/1/2 used)
_MAX_BLOCK_COLS = 16384       # upper bound on the batch (lane) tile
_TEMP_VMEM_BUDGET = 4 << 20   # budget (bytes) for the (C, Bt) match temporary
_PALLAS_MIN_BATCH = 1024      # below this, XLA fusion of the tiny graph wins


def _round_up(n, m):
    return ((n + m - 1) // m) * m


def _cevae_kernel(D, data_ref, pq_ref, scal_ref, out_ref):
    """data_ref: (D+2, Bt) f32 = [x.T ; t.T ; y.T]   (batch on lanes)
       pq_ref:   (C, 2)   f32 = [wq | bq]            (grid-constant)
       scal_ref: (4,)     f32 in SMEM = [wy0, by0, wy1, by1]
       out_ref:  (8, Bt)  rows 0/1/2 = z_logits / y_logits0 / y_logits1."""
    data = data_ref[...]                           # (D+2, Bt)
    Bt = data.shape[1]
    C = pq_ref.shape[0]

    t_row = data[D:D + 1, :]                       # (1, Bt)
    y_row = data[D + 1:D + 2, :]                   # (1, Bt)

    # ---------------- Encoder (z_mode == 'binary') ----------------
    # itertools.product([0,1], repeat=D+1) ordering: t is the MSB, x_j follow:
    #   idx = t*2^D + sum_j x_j * 2^(D-1-j)
    # Computed in int32 (inputs assumed binary 0/1) and compared against an
    # int32 iota -> no float-equality hazard.
    idx = t_row.astype(jnp.int32) * (2 ** D)
    for j in range(D):                             # D static & tiny: sublane slices
        idx = idx + data[j:j + 1, :].astype(jnp.int32) * (2 ** (D - 1 - j))
    comb = jax.lax.broadcasted_iota(jnp.int32, (C, Bt), 0)
    match = comb == idx                            # (C, Bt), one-hot per column

    wq = pq_ref[:, 0:1]                            # (C, 1) q_z_dummies weights
    bq = pq_ref[:, 1:2]                            # (C, 1) q_z_dummies biases
    # q_z_dummies[i](y) = wq_i*y + bq_i, gated on the matching combination.
    # TODO(synk): PyTorch promotes this accumulation via .double(); match is
    # one-hot per column so the float32 sum is exact and identical here.
    vals = y_row * wq + bq                         # (C, Bt)
    z_logits = jnp.sum(jnp.where(match, vals, 0.0), axis=0, keepdims=True)  # (1, Bt)

    # -------- Decoder y-logits at z=0 / z=1 (only batch-dependent decoder outs) ----
    wy0 = scal_ref[0]
    by0 = scal_ref[1]
    wy1 = scal_ref[2]
    by1 = scal_ref[3]
    one_m_t = 1.0 - t_row
    yl0 = by1 * t_row + by0 * one_m_t                      # z = 0
    yl1 = (wy1 + by1) * t_row + (wy0 + by0) * one_m_t      # z = 1

    # -------- Direct sublane-row stores (no lane padding, no where-chain) ----------
    out_ref[0:1, :] = z_logits
    out_ref[1:2, :] = yl0
    out_ref[2:3, :] = yl1
    out_ref[3:_OUT_ROWS, :] = jnp.zeros((_OUT_ROWS - 3, Bt), jnp.float32)


def _cevae_core_pallas(params, x, t, y):
    B, D = x.shape
    C = 2 ** (D + 1)
    f32 = jnp.float32

    # Pack inputs into one (D+2, B) slab with batch on the lane (last) axis.
    data = jnp.concatenate(
        [x.astype(f32).T, t.astype(f32).T, y.astype(f32).T], axis=0)    # (D+2, B)

    # Batch tile along lanes: multiple of 128, big enough to amortize per-step
    # pipeline overhead (~0.35us), small enough that the (C, Bt) match temporary
    # stays within _TEMP_VMEM_BUDGET (matters if D grows).
    cap = max(128, (_TEMP_VMEM_BUDGET // (4 * C)) // 128 * 128)
    Bt = min(_MAX_BLOCK_COLS, cap, _round_up(B, 128))
    Bp = _round_up(B, Bt)
    if Bp != B:
        # Padded batch columns compute garbage; they are sliced off below and
        # never consumed.
        data = jnp.pad(data, ((0, 0), (0, Bp - B)))
    grid = (Bp // Bt,)

    # Parameter slabs: (C, 2) VMEM [wq | bq] and (4,) SMEM y-scalars.
    pq = jnp.stack([params["wq"][0].astype(f32), params["bq"][0].astype(f32)], axis=1)
    scal = jnp.concatenate(
        [params["wy0"].ravel(), params["by0"].ravel(),
         params["wy1"].ravel(), params["by1"].ravel()]).astype(f32)

    out_slab = pl.pallas_call(
        functools.partial(_cevae_kernel, D),
        out_shape=jax.ShapeDtypeStruct((_OUT_ROWS, Bp), f32),
        grid_spec=pltpu.PrefetchScalarGridSpec(
            num_scalar_prefetch=0,
            grid=grid,
            in_specs=[
                pl.BlockSpec((D + 2, Bt), lambda i: (0, i)),         # data (lane-blocked)
                pl.BlockSpec((C, 2), lambda i: (0, 0)),              # [wq|bq] grid-constant
                pl.BlockSpec(memory_space=pltpu.MemorySpace.SMEM),   # y-scalars
            ],
            out_specs=pl.BlockSpec((_OUT_ROWS, Bt), lambda i: (0, i)),
        ),
        compiler_params=pltpu.CompilerParams(
            dimension_semantics=("parallel",),
        ),
    )(data, pq, scal)

    z_logits = out_slab[0:1, :B].T       # (B, 1)
    y_logits0 = out_slab[1:2, :B].T      # (B, 1)
    y_logits1 = out_slab[2:3, :B].T      # (B, 1)
    return z_logits, y_logits0, y_logits1


def _cevae_core_jnp(params, x, t, y):
    """Plain-jnp reference / small-batch fast path (identical math)."""
    B, D = x.shape
    C = 2 ** (D + 1)
    f32 = jnp.float32
    xf = x.astype(f32)
    tf = t.astype(f32)
    yf = y.astype(f32)

    idx = tf.astype(jnp.int32) * (2 ** D)
    for j in range(D):
        idx = idx + xf[:, j:j + 1].astype(jnp.int32) * (2 ** (D - 1 - j))
    comb = jnp.arange(C, dtype=jnp.int32)[None, :]
    match = (idx == comb).astype(f32)                                  # (B, C)
    z_logits = jnp.sum((yf * params["wq"][0][None, :] + params["bq"][0][None, :])
                       * match, axis=1, keepdims=True)

    wy0 = params["wy0"][0, 0]
    by0 = params["by0"][0, 0]
    wy1 = params["wy1"][0, 0]
    by1 = params["by1"][0, 0]
    y_logits0 = by1 * tf + by0 * (1.0 - tf)
    y_logits1 = (wy1 + by1) * tf + (wy0 + by0) * (1.0 - tf)
    return z_logits, y_logits0, y_logits1


def dummy_cevae_forward(params, x, t, y, use_pallas=None):
    B, D = x.shape
    if use_pallas is None:
        use_pallas = B >= _PALLAS_MIN_BATCH
    core = _cevae_core_pallas if use_pallas else _cevae_core_jnp
    z_logits, y_logits0, y_logits1 = core(params, x, t, y)

    # Batch-invariant decoder logits (pure parameter broadcasts) hoisted out of
    # the kernel.
    x_logits0 = jnp.broadcast_to(params["bx"], (B, D))                  # z = 0
    x_logits1 = jnp.broadcast_to(params["wx"] + params["bx"], (B, D))   # z = 1
    t_logits0 = jnp.broadcast_to(params["bt"], (B, 1))                  # z = 0
    t_logits1 = jnp.broadcast_to(params["wt"] + params["bt"], (B, 1))   # z = 1

    return (z_logits, x_logits0, x_logits1, t_logits0, t_logits1,
            y_logits0, y_logits1, params["pz_logit"])


def init_params(key, input_dim):
    """Deterministic synthetic parameters matching dummyCEVAE's Linear(1,1) stacks."""
    D = input_dim
    C = 2 ** (D + 1)
    ks = jax.random.split(key, 10)
    scale = 0.1
    f32 = jnp.float32
    return dict(
        # Encoder.q_z_dummies: C independent Linear(1,1) layers
        wq=scale * jax.random.normal(ks[0], (1, C), f32),
        bq=scale * jax.random.normal(ks[1], (1, C), f32),
        # Decoder.hidden_x_nns_binary: D independent Linear(1,1) layers
        wx=scale * jax.random.normal(ks[2], (1, D), f32),
        bx=scale * jax.random.normal(ks[3], (1, D), f32),
        # Decoder.treatment_logits_nn
        wt=scale * jax.random.normal(ks[4], (1, 1), f32),
        bt=scale * jax.random.normal(ks[5], (1, 1), f32),
        # Decoder.y0_nn / y1_nn
        wy0=scale * jax.random.normal(ks[6], (1, 1), f32),
        by0=scale * jax.random.normal(ks[7], (1, 1), f32),
        wy1=scale * jax.random.normal(ks[8], (1, 1), f32),
        by1=scale * jax.random.normal(ks[9], (1, 1), f32),
        # dummyCEVAE.pz_logit = nn.Parameter([0.0])
        pz_logit=jnp.zeros((1,), f32),
    )


if __name__ == "__main__":
    key = jax.random.PRNGKey(0)
    k_x, k_t, k_y, k_p = jax.random.split(key, 4)

    B, D = 8, 4   # batch=8, input_dim=4 -> 2**(D+1)=32 dummy combinations
    x = jax.random.bernoulli(k_x, 0.5, (B, D)).astype(jnp.float32)
    t = jax.random.bernoulli(k_t, 0.5, (B, 1)).astype(jnp.float32)
    y = jax.random.normal(k_y, (B, 1), jnp.float32)

    params = init_params(k_p, D)

    # Force the Pallas path so the kernel is exercised at this demo size
    # (auto-dispatch would take the plain-jnp fast path for B < 1024).
    outs = dummy_cevae_forward(params, x, t, y, use_pallas=True)
    jax.block_until_ready(outs)

    ref = dummy_cevae_forward(params, x, t, y, use_pallas=False)
    for o, r in zip(outs, ref):
        assert jnp.allclose(o, r, atol=1e-5, rtol=1e-5), "Pallas/jnp mismatch"

    print("KERNEL_OK")
</pallas_src>

<mosaic_0001>
module attributes {stable_mosaic.version = 11 : i64} {
  func.func @_cevae_kernel(%arg0: i32, %arg1: memref<6x128xf32, #tpu.memory_space<vmem>>, %arg2: memref<32x2xf32, #tpu.memory_space<vmem>>, %arg3: memref<4xf32, #tpu.memory_space<smem>>, %arg4: memref<8x128xf32, #tpu.memory_space<vmem>>) attributes {dimension_semantics = [#tpu.dimension_semantics<parallel>], iteration_bounds = array<i64: 1>, scalar_prefetch = 0 : i64, scratch_operands = 0 : i64, tpu.core_type = #tpu.core_type<tc>, window_params = [{transform_indices = @transform_0, window_bounds = array<i64: 6, 128>}, {pipeline_mode = #tpu.pipeline_mode<synchronous>, transform_indices = @transform_1, window_bounds = array<i64: 32, 2>}, {transform_indices = @transform_2, window_bounds = array<i64: 4>}, {transform_indices = @transform_3, window_bounds = array<i64: 8, 128>}]} {
    %c0 = arith.constant 0 : index
    %c0_0 = arith.constant 0 : index
    %0 = vector.load %arg1[%c0, %c0_0] : memref<6x128xf32, #tpu.memory_space<vmem>>, vector<6x128xf32>
    %1 = vector.extract_strided_slice %0 {offsets = [4, 0], sizes = [1, 128], strides = [1, 1]} : vector<6x128xf32> to vector<1x128xf32>
    %2 = vector.extract_strided_slice %0 {offsets = [5, 0], sizes = [1, 128], strides = [1, 1]} : vector<6x128xf32> to vector<1x128xf32>
    %3 = arith.fptosi %1 : vector<1x128xf32> to vector<1x128xi32>
    %c16_i32 = arith.constant 16 : i32
    %4 = vector.broadcast %c16_i32 : i32 to vector<1x128xi32>
    %5 = arith.muli %3, %4 : vector<1x128xi32>
    %6 = vector.extract_strided_slice %0 {offsets = [0, 0], sizes = [1, 128], strides = [1, 1]} : vector<6x128xf32> to vector<1x128xf32>
    %7 = arith.fptosi %6 : vector<1x128xf32> to vector<1x128xi32>
    %c8_i32 = arith.constant 8 : i32
    %8 = vector.broadcast %c8_i32 : i32 to vector<1x128xi32>
    %9 = arith.muli %7, %8 : vector<1x128xi32>
    %10 = arith.addi %5, %9 : vector<1x128xi32>
    %11 = vector.extract_strided_slice %0 {offsets = [1, 0], sizes = [1, 128], strides = [1, 1]} : vector<6x128xf32> to vector<1x128xf32>
    %12 = arith.fptosi %11 : vector<1x128xf32> to vector<1x128xi32>
    %c4_i32 = arith.constant 4 : i32
    %13 = vector.broadcast %c4_i32 : i32 to vector<1x128xi32>
    %14 = arith.muli %12, %13 : vector<1x128xi32>
    %15 = arith.addi %10, %14 : vector<1x128xi32>
    %16 = vector.extract_strided_slice %0 {offsets = [2, 0], sizes = [1, 128], strides = [1, 1]} : vector<6x128xf32> to vector<1x128xf32>
    %17 = arith.fptosi %16 : vector<1x128xf32> to vector<1x128xi32>
    %c2_i32 = arith.constant 2 : i32
    %18 = vector.broadcast %c2_i32 : i32 to vector<1x128xi32>
    %19 = arith.muli %17, %18 : vector<1x128xi32>
    %20 = arith.addi %15, %19 : vector<1x128xi32>
    %21 = vector.extract_strided_slice %0 {offsets = [3, 0], sizes = [1, 128], strides = [1, 1]} : vector<6x128xf32> to vector<1x128xf32>
    %22 = arith.fptosi %21 : vector<1x128xf32> to vector<1x128xi32>
    %c1_i32 = arith.constant 1 : i32
    %23 = vector.broadcast %c1_i32 : i32 to vector<1x128xi32>
    %24 = arith.muli %22, %23 : vector<1x128xi32>
    %25 = arith.addi %20, %24 : vector<1x128xi32>
    %26 = tpu.iota {dimensions = array<i32: 0>} : vector<32x128xi32>
    %27 = vector.broadcast %25 : vector<1x128xi32> to vector<32x128xi32>
    %28 = arith.cmpi eq, %26, %27 : vector<32x128xi32>
    %c0_1 = arith.constant 0 : index
    %c0_2 = arith.constant 0 : index
    %29 = vector.load %arg2[%c0_1, %c0_2] : memref<32x2xf32, #tpu.memory_space<vmem>>, vector<32x1xf32>
    %c0_3 = arith.constant 0 : index
    %c1 = arith.constant 1 : index
    %30 = vector.load %arg2[%c0_3, %c1] : memref<32x2xf32, #tpu.memory_space<vmem>>, vector<32x1xf32>
    %31 = vector.broadcast %2 : vector<1x128xf32> to vector<32x128xf32>
    %32 = vector.broadcast %29 : vector<32x1xf32> to vector<32x128xf32>
    %33 = arith.mulf %31, %32 : vector<32x128xf32>
    %34 = vector.broadcast %30 : vector<32x1xf32> to vector<32x128xf32>
    %35 = arith.addf %33, %34 : vector<32x128xf32>
    %cst = arith.constant 0.000000e+00 : f32
    %36 = vector.broadcast %cst : f32 to vector<32x128xf32>
    %37 = arith.select %28, %35, %36 : vector<32x128xi1>, vector<32x128xf32>
    %cst_4 = arith.constant dense<0.000000e+00> : vector<128xf32>
    %38 = vector.multi_reduction <add>, %37, %cst_4 [0] : vector<32x128xf32> to vector<128xf32>
    %39 = vector.shape_cast %38 : vector<128xf32> to vector<1x128xf32>
    %c0_5 = arith.constant 0 : index
    %40 = memref.load %arg3[%c0_5] : memref<4xf32, #tpu.memory_space<smem>>
    %c1_6 = arith.constant 1 : index
    %41 = memref.load %arg3[%c1_6] : memref<4xf32, #tpu.memory_space<smem>>
    %c2 = arith.constant 2 : index
    %42 = memref.load %arg3[%c2] : memref<4xf32, #tpu.memory_space<smem>>
    %c3 = arith.constant 3 : index
    %43 = memref.load %arg3[%c3] : memref<4xf32, #tpu.memory_space<smem>>
    %cst_7 = arith.constant 1.000000e+00 : f32
    %44 = vector.broadcast %cst_7 : f32 to vector<1x128xf32>
    %45 = arith.subf %44, %1 : vector<1x128xf32>
    %46 = vector.broadcast %43 : f32 to vector<1x128xf32>
    %47 = arith.mulf %46, %1 : vector<1x128xf32>
    %48 = vector.broadcast %41 : f32 to vector<1x128xf32>
    %49 = arith.mulf %48, %45 : vector<1x128xf32>
    %50 = arith.addf %47, %49 : vector<1x128xf32>
    %51 = arith.addf %42, %43 : f32
    %52 = vector.broadcast %51 : f32 to vector<1x128xf32>
    %53 = arith.mulf %52, %1 : vector<1x128xf32>
    %54 = arith.addf %40, %41 : f32
    %55 = vector.broadcast %54 : f32 to vector<1x128xf32>
    %56 = arith.mulf %55, %45 : vector<1x128xf32>
    %57 = arith.addf %53, %56 : vector<1x128xf32>
    %c0_8 = arith.constant 0 : index
    %c0_9 = arith.constant 0 : index
    %58 = vector.load %arg4[%c0_8, %c0_9] : memref<8x128xf32, #tpu.memory_space<vmem>>, vector<1x128xf32>
    tpu.vector_store %arg4[%c0_8, %c0_9], %39 {strides = array<i32>} : memref<8x128xf32, #tpu.memory_space<vmem>>, vector<1x128xf32>,
    %c1_10 = arith.constant 1 : index
    %c0_11 = arith.constant 0 : index
    %59 = vector.load %arg4[%c1_10, %c0_11] : memref<8x128xf32, #tpu.memory_space<vmem>>, vector<1x128xf32>
    tpu.vector_store %arg4[%c1_10, %c0_11], %50 {strides = array<i32>} : memref<8x128xf32, #tpu.memory_space<vmem>>, vector<1x128xf32>,
    %c2_12 = arith.constant 2 : index
    %c0_13 = arith.constant 0 : index
    %60 = vector.load %arg4[%c2_12, %c0_13] : memref<8x128xf32, #tpu.memory_space<vmem>>, vector<1x128xf32>
    tpu.vector_store %arg4[%c2_12, %c0_13], %57 {strides = array<i32>} : memref<8x128xf32, #tpu.memory_space<vmem>>, vector<1x128xf32>,
    %cst_14 = arith.constant 0.000000e+00 : f32
    %61 = vector.broadcast %cst_14 : f32 to vector<5x128xf32>
    %c3_15 = arith.constant 3 : index
    %c0_16 = arith.constant 0 : index
    %62 = vector.load %arg4[%c3_15, %c0_16] : memref<8x128xf32, #tpu.memory_space<vmem>>, vector<5x128xf32>
    tpu.vector_store %arg4[%c3_15, %c0_16], %61 {strides = array<i32>} : memref<8x128xf32, #tpu.memory_space<vmem>>, vector<5x128xf32>,
    return
  }
  func.func @transform_0(%arg0: i32) -> (i32, i32) {
    %c0_i32 = arith.constant 0 : i32
    %c0_i32_0 = arith.constant 0 : i32
    return %c0_i32, %arg0 : i32, i32
  }
  func.func @transform_1(%arg0: i32) -> (i32, i32) {
    %c0_i32 = arith.constant 0 : i32
    %c0_i32_0 = arith.constant 0 : i32
    %c0_i32_1 = arith.constant 0 : i32
    return %c0_i32, %c0_i32_0 : i32, i32
  }
  func.func @transform_2(%arg0: i32) -> i32 {
    %c0_i32 = arith.constant 0 : i32
    %c0_i32_0 = arith.constant 0 : i32
    return %c0_i32 : i32
  }
  func.func @transform_3(%arg0: i32) -> (i32, i32) {
    %c0_i32 = arith.constant 0 : i32
    %c0_i32_0 = arith.constant 0 : i32
    return %c0_i32, %arg0 : i32, i32
  }
}

</mosaic_0001>

<llo_original>
// kernel: tpu_custom_call.1
$region0: #{tpu_custom_call.1}
  #allocation0 [shape = 'u32[]', space=smem, size = 0x4, offset = 0x4, fixed_abs, tag = 'smem constant byte address 0x4 - core index']
  #allocation1 [shape = 'u32[144,128]{1,0:T(1,128)}', space=vmem, size = 0x12000, scoped, tag = 'internal scratch']
  %s0 = inlined_call_operand.vmem [shape: f32[6,128], index: 0, kind: input, shape index: {}]
  %s1 = inlined_call_operand.vmem [shape: f32[32,2], index: 1, kind: input, shape index: {}]
  %s2 = inlined_call_operand.vmem [shape: f32[4], index: 2, kind: input, shape index: {}]
  %s3 = inlined_call_operand.hbm [shape: f32[8,128], index: 3, kind: output, shape index: {}]
  %s4 = sld [smem:[#allocation0]]
  $region26: #{tpu_custom_call.1} parent=0
    _
  %s6 = ssub.s32 1, %s4
  %s7 = scalar_select 0, %s6, %s4
  $region1: #{tpu_custom_call.1} parent=0
    #allocation2 [shape = 'u8[512]{0}', space=smem, size = 0x200, scoped, tag = 'input window, operand 2, single buffered']
    #allocation3 [shape = 's32[1]{0}', space=sflag, size = 0x4, scoped, tag = 'scoped memory for tpu_custom_call.1']
    #allocation4 [shape = 's32[1]{0}', space=sflag, size = 0x4, scoped, tag = 'scoped memory for tpu_custom_call.1']
    #allocation5 [shape = 'u8[4096]{0}', space=vmem, size = 0x1000, scoped, tag = 'output window, operand 0, single buffered']
    %8 = vsyncpa [#allocation4], 0
    %9 = vsyncpa [#allocation3], 0
    // Predicated region
    $region2: #{tpu_custom_call.1} parent=1 // pred_check
      _
    $region3: #{tpu_custom_call.1} parent=1 // pred_check_branch
      %11 = sbr.rel (0) target = $region5
    $region4: #{tpu_custom_call.1} parent=1 // pred_region
      _
    $region5: #{tpu_custom_call.1} parent=1 // pred_fallthru
      _
    // Predicated region
    $region6: #{tpu_custom_call.1} parent=1 // pred_check
      _
    $region7: #{tpu_custom_call.1} parent=1 // pred_check_branch
      %13 = sbr.rel (0) target = $region9
    $region8: #{tpu_custom_call.1} parent=1 // pred_region
      _
    $region9: #{tpu_custom_call.1} parent=1 // pred_fallthru
      _
    // Predicated region
    $region10: #{tpu_custom_call.1} parent=1 // pred_check
      _
    $region11: #{tpu_custom_call.1} parent=1 // pred_check_branch
      %15 = sbr.rel (0) target = $region13
    $region12: #{tpu_custom_call.1} parent=1 // pred_region
      %s17 = ssub.s32 16, 16
      %18 = vsyncadd [#allocation4], %s17
      %s20 = sshll.u32 %s2, 4
      %s21 = int_to_ptr.vmem [resolvable:$true] %s20
      %23 = dma.vmem_to_smem %s21, 16, [#allocation2], [#allocation4]
    $region13: #{tpu_custom_call.1} parent=1 // pred_fallthru
      _
    // Predicated region
    $region14: #{tpu_custom_call.1} parent=1 // pred_check
      _
    $region15: #{tpu_custom_call.1} parent=1 // pred_check_branch
      %25 = sbr.rel (0) target = $region17
    $region16: #{tpu_custom_call.1} parent=1 // pred_region
      %26 = dma.done [#allocation4], 16
    $region17: #{tpu_custom_call.1} parent=1 // pred_fallthru
      _
    %27 = sfence
    %v28 = vld [vmem:[%s0] sm:$0x3f]
    %v29 = vcvt.f32.s32.to.zero.pseudo %v28
    %v30 = vmul.u32 %v29, 16
    %v31 = vmul.u32 %v29, 8
    %v32 = vrot.slane %v31, 4
    %v33 = vadd.s32 %v30, %v32
    %v34 = vmul.u32 %v29, 4
    %v35 = vrot.slane %v34, 5
    %v36 = vadd.s32 %v33, %v35
    %v37 = vmul.u32 %v29, 2
    %v38 = vrot.slane %v37, 6
    %v39 = vadd.s32 %v36, %v38
    %v40 = vrot.slane %v29, 7
    %v41 = vadd.s32 %v39, %v40
    %v42 = vlaneseq
    %v43 = vshrl.u32 %v42, 7
    %v44 = vadd.s32 %v43, 8
    %v45 = vadd.s32 %v43, 16
    %v46 = vadd.s32 %v43, 24
    %v47 = vlaneseq
    %v48 = vshrl.u32 %v47, 7
    %v49 = vsub.s32 4, %v48
    %v50 = vrot.slane %v41, %v49
    %vm51 = vcmp.eq.s32.totalorder %v43, %v50
    %vm52 = vcmp.eq.s32.totalorder %v44, %v50
    %vm53 = vcmp.eq.s32.totalorder %v45, %v50
    %vm54 = vcmp.eq.s32.totalorder %v46, %v50
    %v55 = vld [vmem:[%s1] sm:$0xff]
    %v56 = vld [vmem:[%s1 + $0x8] sm:$0xff]
    %v57 = vld [vmem:[%s1 + $0x10] sm:$0xff]
    %v58 = vld [vmem:[%s1 + $0x18] sm:$0xff]
    %v59 = vlaneseq
    %v60 = vshrl.u32 %v59, 7
    %v61 = vsub.s32 5, %v60
    %v62 = vrot.slane %v28, %v61
    %64 = vset.pattern.permute.xlu0 0
    %65 = vperm.xlu0 %64, %v55
    %v66 = vpop.permute.xlu0 %65
    %69 = vset.pattern.permute.xlu0 0
    %70 = vperm.xlu0 %69, %v56
    %v71 = vpop.permute.xlu0 %70
    %74 = vset.pattern.permute.xlu0 0
    %75 = vperm.xlu0 %74, %v57
    %v76 = vpop.permute.xlu0 %75
    %79 = vset.pattern.permute.xlu0 0
    %80 = vperm.xlu0 %79, %v58
    %v81 = vpop.permute.xlu0 %80
    %v83 = vmul.f32 %v62, %v66
    %v84 = vmul.f32 %v62, %v71
    %v85 = vmul.f32 %v62, %v76
    %v86 = vmul.f32 %v62, %v81
    %87 = vset.pattern.permute.xlu0 1
    %88 = vperm.xlu0 %87, %v55
    %v89 = vpop.permute.xlu0 %88
    %91 = vset.pattern.permute.xlu0 1
    %92 = vperm.xlu0 %91, %v56
    %v93 = vpop.permute.xlu0 %92
    %95 = vset.pattern.permute.xlu0 1
    %96 = vperm.xlu0 %95, %v57
    %v97 = vpop.permute.xlu0 %96
    %99 = vset.pattern.permute.xlu0 1
    %100 = vperm.xlu0 %99, %v58
    %v101 = vpop.permute.xlu0 %100
    %v103 = vadd.f32 %v83, %v89
    %v104 = vadd.f32 %v84, %v93
    %v105 = vadd.f32 %v85, %v97
    %v106 = vadd.f32 %v86, %v101
    %v107 = vsel %vm51, %v103, 0.0
    %v108 = vsel %vm52, %v104, 0.0
    %v109 = vsel %vm53, %v105, 0.0
    %v110 = vsel %vm54, %v106, 0.0
    %v111 = vadd.f32 %v107, %v108
    %v112 = vadd.f32 %v111, %v109
    %v113 = vadd.f32 %v112, %v110
    %v114 = vrot.slane %v113, 4
    %v115 = vadd.f32 %v113, %v114
    %v116 = vrot.slane %v115, 2
    %v117 = vadd.f32 %v115, %v116
    %v118 = vrot.slane %v117, 1
    %v119 = vadd.f32 %v117, %v118
    %s120 = sld [smem:[#allocation2]]
    %s121 = sld [smem:[#allocation2 + $0x1]]
    %s122 = sld [smem:[#allocation2 + $0x2]]
    %s123 = sld [smem:[#allocation2 + $0x3]]
    %v124 = vsub.f32 1.0, %v28
    %v125 = vstv %s123
    %v126 = vmul.f32 %v125, %v28
    %v127 = vstv %s121
    %v128 = vmul.f32 %v127, %v124
    %v129 = vadd.f32 %v126, %v128
    %s130 = sadd.f32 %s122, %s123
    %v131 = vstv %s130
    %v132 = vmul.f32 %v131, %v28
    %s133 = sadd.f32 %s120, %s121
    %v134 = vstv %s133
    %v135 = vmul.f32 %v134, %v124
    %v136 = vadd.f32 %v132, %v135
    %137 = vst [vmem:[#allocation5] sm:$0x1] %v119
    %138 = vst [vmem:[#allocation5 - $0x3] sm:$0x10] %v129
    %139 = vst [vmem:[#allocation5 - $0x2] sm:$0x10] %v136
    %140 = vst [vmem:[#allocation5 + $0x3] sm:$0x1f] 0.0
    // Predicated region
    $region18: #{tpu_custom_call.1} parent=1 // pred_check
      _
    $region19: #{tpu_custom_call.1} parent=1 // pred_check_branch
      %142 = sbr.rel (0) target = $region21
    $region20: #{tpu_custom_call.1} parent=1 // pred_region
      %s144 = ssub.s32 128, 128
      %145 = vsyncadd [#allocation3], %s144
      %s147 = sshll.u32 [#allocation5], 4
      %s148 = int_to_ptr.vmem [resolvable:$true] %s147
      %150 = dma.vmem_to_hbm [thread:$0]  %s148, 128, %s3, [#allocation3]
    $region21: #{tpu_custom_call.1} parent=1 // pred_fallthru
      _
    // Predicated region
    $region22: #{tpu_custom_call.1} parent=1 // pred_check
      _
    $region23: #{tpu_custom_call.1} parent=1 // pred_check_branch
      %152 = sbr.rel (0) target = $region25
    $region24: #{tpu_custom_call.1} parent=1 // pred_region
      %153 = dma.done [#allocation3], 128
    $region25: #{tpu_custom_call.1} parent=1 // pred_fallthru
      _
    %154 = vsyncpa [#allocation3], 1
    %155 = vsyncpa [#allocation4], 1

</llo_original>
